<compile_context>
chip_gen: v7x
topology: tpu7x:2x2x1
jax: 0.10.0
libtpu: 0.0.40
codegen_flags: <defaults>
</compile_context>

<pallas_src>
import functools

import jax
import jax.numpy as jnp
from jax.experimental import pallas as pl
from jax.experimental.pallas import tpu as pltpu


C_IN, C_CONV, EMB_DIM, PROJ_HID, PROJ_OUT = 4, 8, 32, 32, 16
LANE = 128  # pad every matmul K/N to the 128-lane width


# ----------------------------------------------------------------------------
# Fused forward kernel
#   grid = (N, S_TILES); each step consumes one row-tile of the im2col matrix
#   for image n, accumulates the (ReLU'd) pooled sum in VMEM scratch, and on
#   the last tile of each image runs the three tiny FC layers and writes the
#   embedding / projection rows.
# ----------------------------------------------------------------------------
def _fused_forward_kernel(
    patches_ref,          # [TR, 9*C_IN]     bf16  (row tile of im2col matrix)
    conv_w_ref,           # [9*C_IN, 128]    bf16  (cols >= C_CONV are zero)
    conv_b_ref,           # [1, 128]         f32
    enc_w_ref,            # [128, 128]       f32
    enc_b_ref,            # [1, 128]         f32
    w1_ref, b1_ref,       # [128, 128] f32 / [1, 128] f32
    w2_ref, b2_ref,       # [128, 128] f32 / [1, 128] f32
    emb_ref,              # [1, 1, EMB_DIM]  f32  out
    proj_ref,             # [1, 1, PROJ_OUT] f32  out
    pool_acc,             # [1, 128]         f32  scratch (running pool sum)
    *, inv_hw):
  s = pl.program_id(1)
  ns = pl.num_programs(1)

  # Conv as a lane-dense matmul (bf16 operands, f32 accumulation) + bias + ReLU.
  conv = jnp.dot(patches_ref[...], conv_w_ref[...],
                 preferred_element_type=jnp.float32)          # [TR, 128]
  conv = jnp.maximum(conv + conv_b_ref[...], 0.0)             # ReLU per pixel

  # Fused global-average pool: running sum over the pixel (row) axis.
  @pl.when(s == 0)
  def _():
    pool_acc[...] = jnp.zeros_like(pool_acc)

  pool_acc[...] += jnp.sum(conv, axis=0, keepdims=True)       # [1, 128]

  # Epilogue (once per image): finish pool + enc_fc + proj MLP, write outputs.
  @pl.when(s == ns - 1)
  def _():
    pooled = pool_acc[...] * inv_hw                           # mean over H*W
    emb = jnp.dot(pooled, enc_w_ref[...],
                  preferred_element_type=jnp.float32) + enc_b_ref[...]
    h = jnp.maximum(
        jnp.dot(emb, w1_ref[...],
                preferred_element_type=jnp.float32) + b1_ref[...], 0.0)
    proj = jnp.dot(h, w2_ref[...],
                   preferred_element_type=jnp.float32) + b2_ref[...]
    emb_ref[...] = emb[:, :EMB_DIM].reshape(1, 1, EMB_DIM)
    proj_ref[...] = proj[:, :PROJ_OUT].reshape(1, 1, PROJ_OUT)


# ----------------------------------------------------------------------------
# XLA-side glue: im2col of the 3x3 / pad=1 / stride=1 conv (tap order (dy,dx,c))
# ----------------------------------------------------------------------------
def im2col_3x3_same(x_nhwc):
  N, H, W, C = x_nhwc.shape
  xp = jnp.pad(x_nhwc, ((0, 0), (1, 1), (1, 1), (0, 0)))
  taps = [xp[:, dy:dy + H, dx:dx + W, :] for dy in range(3) for dx in range(3)]
  return jnp.concatenate(taps, axis=-1).reshape(N * H * W, 9 * C)


# ----------------------------------------------------------------------------
# Forward:  emb = encoder(x); proj = model(emb); return (emb, proj)
# ----------------------------------------------------------------------------
def contrastive_forward(params, x_nchw, *, tile_rows=128):
  N, C, H, W = x_nchw.shape
  HW = H * W
  assert C == C_IN

  x_nhwc = jnp.transpose(x_nchw, (0, 2, 3, 1))                 # NCHW -> NHWC
  patches = im2col_3x3_same(x_nhwc).astype(jnp.bfloat16)       # [N*HW, 9*C]

  if HW % tile_rows != 0:
    tile_rows = HW
  s_tiles = HW // tile_rows

  kernel = functools.partial(_fused_forward_kernel, inv_hw=1.0 / float(HW))

  flops = 2 * N * HW * (9 * C) * LANE + 2 * N * 3 * LANE * LANE
  bytes_accessed = (patches.size * 2                 # bf16 patches
                    + (9 * C) * LANE * 2             # bf16 conv weight
                    + 3 * LANE * LANE * 4            # f32 FC weights
                    + 4 * LANE * 4                   # f32 biases
                    + N * (EMB_DIM + PROJ_OUT) * 4)  # outputs

  emb3, proj3 = pl.pallas_call(
      kernel,
      out_shape=(jax.ShapeDtypeStruct((N, 1, EMB_DIM), jnp.float32),
                 jax.ShapeDtypeStruct((N, 1, PROJ_OUT), jnp.float32)),
      grid_spec=pltpu.PrefetchScalarGridSpec(
          num_scalar_prefetch=0,
          grid=(N, s_tiles),
          in_specs=[
              pl.BlockSpec((tile_rows, 9 * C),
                           lambda n, s: (n * s_tiles + s, 0)),
              pl.BlockSpec((9 * C, LANE), lambda n, s: (0, 0)),
              pl.BlockSpec((1, LANE), lambda n, s: (0, 0)),
              pl.BlockSpec((LANE, LANE), lambda n, s: (0, 0)),
              pl.BlockSpec((1, LANE), lambda n, s: (0, 0)),
              pl.BlockSpec((LANE, LANE), lambda n, s: (0, 0)),
              pl.BlockSpec((1, LANE), lambda n, s: (0, 0)),
              pl.BlockSpec((LANE, LANE), lambda n, s: (0, 0)),
              pl.BlockSpec((1, LANE), lambda n, s: (0, 0)),
          ],
          out_specs=[
              pl.BlockSpec((1, 1, EMB_DIM), lambda n, s: (n, 0, 0)),
              pl.BlockSpec((1, 1, PROJ_OUT), lambda n, s: (n, 0, 0)),
          ],
          scratch_shapes=[pltpu.VMEM((1, LANE), jnp.float32)],
      ),
      compiler_params=pltpu.CompilerParams(
          dimension_semantics=("parallel", "arbitrary"),
          vmem_limit_bytes=32 * 1024 * 1024),
      cost_estimate=pl.CostEstimate(flops=flops, transcendentals=0,
                                    bytes_accessed=bytes_accessed),
  )(patches,
    params["conv_w_pad"], params["conv_b_pad"],
    params["enc_fc_w_pad"], params["enc_fc_b_pad"],
    params["proj_w1_pad"], params["proj_b1_pad"],
    params["proj_w2_pad"], params["proj_b2_pad"])

  return emb3.reshape(N, EMB_DIM), proj3.reshape(N, PROJ_OUT)


# ----------------------------------------------------------------------------
# Pure-JAX reference (uses the same padded params, sliced back to real dims)
# ----------------------------------------------------------------------------
def reference_forward(params, x_nchw):
  N, C, H, W = x_nchw.shape
  x_nhwc = jnp.transpose(x_nchw, (0, 2, 3, 1))
  cols = im2col_3x3_same(x_nhwc)                               # f32
  conv_w = params["conv_w_pad"][:, :C_CONV].astype(jnp.float32)
  conv_b = params["conv_b_pad"][0, :C_CONV]
  conv = jnp.maximum(cols @ conv_w + conv_b, 0.0)
  pooled = conv.reshape(N, H * W, C_CONV).mean(axis=1)
  emb = pooled @ params["enc_fc_w_pad"][:C_CONV, :EMB_DIM] + \
      params["enc_fc_b_pad"][0, :EMB_DIM]
  h = jnp.maximum(emb @ params["proj_w1_pad"][:EMB_DIM, :PROJ_HID] +
                  params["proj_b1_pad"][0, :PROJ_HID], 0.0)
  proj = h @ params["proj_w2_pad"][:PROJ_HID, :PROJ_OUT] + \
      params["proj_b2_pad"][0, :PROJ_OUT]
  return emb, proj


# ----------------------------------------------------------------------------
# Deterministic synthetic parameters, zero-padded to 128 lanes once at init
# ----------------------------------------------------------------------------
def init_params(key):
  ks = jax.random.split(key, 8)
  sc = 0.1
  conv_w = sc * jax.random.normal(ks[0], (9 * C_IN, C_CONV), jnp.float32)
  conv_b = sc * jax.random.normal(ks[1], (C_CONV,), jnp.float32)
  enc_w = sc * jax.random.normal(ks[2], (C_CONV, EMB_DIM), jnp.float32)
  enc_b = sc * jax.random.normal(ks[3], (EMB_DIM,), jnp.float32)
  w1 = sc * jax.random.normal(ks[4], (EMB_DIM, PROJ_HID), jnp.float32)
  b1 = sc * jax.random.normal(ks[5], (PROJ_HID,), jnp.float32)
  w2 = sc * jax.random.normal(ks[6], (PROJ_HID, PROJ_OUT), jnp.float32)
  b2 = sc * jax.random.normal(ks[7], (PROJ_OUT,), jnp.float32)

  def pad_w(w, rows, cols, dtype):
    out = jnp.zeros((rows, cols), jnp.float32)
    return out.at[:w.shape[0], :w.shape[1]].set(w).astype(dtype)

  def pad_b(b, cols):
    out = jnp.zeros((1, cols), jnp.float32)
    return out.at[0, :b.shape[0]].set(b)

  return {
      "conv_w_pad": pad_w(conv_w, 9 * C_IN, LANE, jnp.bfloat16),
      "conv_b_pad": pad_b(conv_b, LANE),
      "enc_fc_w_pad": pad_w(enc_w, LANE, LANE, jnp.float32),
      "enc_fc_b_pad": pad_b(enc_b, LANE),
      "proj_w1_pad": pad_w(w1, LANE, LANE, jnp.float32),
      "proj_b1_pad": pad_b(b1, LANE),
      "proj_w2_pad": pad_w(w2, LANE, LANE, jnp.float32),
      "proj_b2_pad": pad_b(b2, LANE),
  }


if __name__ == "__main__":
  key = jax.random.PRNGKey(0)
  k_x, k_p = jax.random.split(key)
  x = jax.random.normal(k_x, (2, C_IN, 16, 16), jnp.float32)   # NCHW like PyTorch
  params = init_params(k_p)

  emb, proj = jax.jit(contrastive_forward)(params, x)
  jax.block_until_ready((emb, proj))

  assert emb.shape == (2, EMB_DIM)
  assert proj.shape == (2, PROJ_OUT)

  emb_ref, proj_ref = reference_forward(params, x)
  assert jnp.allclose(emb, emb_ref, atol=3e-2, rtol=3e-2)
  assert jnp.allclose(proj, proj_ref, atol=3e-2, rtol=3e-2)

  print("KERNEL_OK")
</pallas_src>

<mosaic_0001>
module attributes {stable_mosaic.version = 11 : i64} {
  func.func @_fused_forward_kernel(%arg0: i32, %arg1: i32, %arg2: memref<128x36xbf16, #tpu.memory_space<vmem>>, %arg3: memref<36x128xbf16, #tpu.memory_space<vmem>>, %arg4: memref<1x128xf32, #tpu.memory_space<vmem>>, %arg5: memref<128x128xf32, #tpu.memory_space<vmem>>, %arg6: memref<1x128xf32, #tpu.memory_space<vmem>>, %arg7: memref<128x128xf32, #tpu.memory_space<vmem>>, %arg8: memref<1x128xf32, #tpu.memory_space<vmem>>, %arg9: memref<128x128xf32, #tpu.memory_space<vmem>>, %arg10: memref<1x128xf32, #tpu.memory_space<vmem>>, %arg11: memref<1x1x32xf32, #tpu.memory_space<vmem>>, %arg12: memref<1x1x16xf32, #tpu.memory_space<vmem>>, %arg13: memref<1x128xf32, #tpu.memory_space<vmem>>) attributes {dimension_semantics = [#tpu.dimension_semantics<parallel>, #tpu.dimension_semantics<arbitrary>], iteration_bounds = array<i64: 2, 2>, scalar_prefetch = 0 : i64, scratch_operands = 1 : i64, tpu.core_type = #tpu.core_type<tc>, window_params = [{transform_indices = @transform_0, window_bounds = array<i64: 128, 36>}, {pipeline_mode = #tpu.pipeline_mode<synchronous>, transform_indices = @transform_1, window_bounds = array<i64: 36, 128>}, {pipeline_mode = #tpu.pipeline_mode<synchronous>, transform_indices = @transform_2, window_bounds = array<i64: 1, 128>}, {pipeline_mode = #tpu.pipeline_mode<synchronous>, transform_indices = @transform_3, window_bounds = array<i64: 128, 128>}, {pipeline_mode = #tpu.pipeline_mode<synchronous>, transform_indices = @transform_4, window_bounds = array<i64: 1, 128>}, {pipeline_mode = #tpu.pipeline_mode<synchronous>, transform_indices = @transform_5, window_bounds = array<i64: 128, 128>}, {pipeline_mode = #tpu.pipeline_mode<synchronous>, transform_indices = @transform_6, window_bounds = array<i64: 1, 128>}, {pipeline_mode = #tpu.pipeline_mode<synchronous>, transform_indices = @transform_7, window_bounds = array<i64: 128, 128>}, {pipeline_mode = #tpu.pipeline_mode<synchronous>, transform_indices = @transform_8, window_bounds = array<i64: 1, 128>}, {transform_indices = @transform_9, window_bounds = array<i64: 1, 1, 32>}, {transform_indices = @transform_10, window_bounds = array<i64: 1, 1, 16>}]} {
    %c0 = arith.constant 0 : index
    %c0_0 = arith.constant 0 : index
    %0 = vector.load %arg2[%c0, %c0_0] : memref<128x36xbf16, #tpu.memory_space<vmem>>, vector<128x36xbf16>
    %c0_1 = arith.constant 0 : index
    %c0_2 = arith.constant 0 : index
    %1 = vector.load %arg3[%c0_1, %c0_2] : memref<36x128xbf16, #tpu.memory_space<vmem>>, vector<36x128xbf16>
    %cst = arith.constant dense<0.000000e+00> : vector<128x128xf32>
    %2 = tpu.matmul %0, %1, %cst {dimension_numbers = #tpu.dot_dimension_numbers<[1], [0], [0], [1], [0, 0, 1, 1], [], []>} : vector<128x36xbf16>, vector<36x128xbf16>, vector<128x128xf32> -> vector<128x128xf32>
    %c0_3 = arith.constant 0 : index
    %c0_4 = arith.constant 0 : index
    %3 = vector.load %arg4[%c0_3, %c0_4] : memref<1x128xf32, #tpu.memory_space<vmem>>, vector<1x128xf32>
    %4 = vector.broadcast %3 : vector<1x128xf32> to vector<128x128xf32>
    %5 = arith.addf %2, %4 : vector<128x128xf32>
    %cst_5 = arith.constant 0.000000e+00 : f32
    %6 = vector.broadcast %cst_5 : f32 to vector<128x128xf32>
    %7 = arith.maximumf %5, %6 : vector<128x128xf32>
    %c0_i32 = arith.constant 0 : i32
    %8 = arith.cmpi eq, %arg1, %c0_i32 : i32
    %9 = arith.extui %8 : i1 to i32
    %c0_i32_6 = arith.constant 0 : i32
    %10 = arith.cmpi ne, %9, %c0_i32_6 : i32
    scf.if %10 {
      %cst_13 = arith.constant 0.000000e+00 : f32
      %19 = vector.broadcast %cst_13 : f32 to vector<1x128xf32>
      %c0_14 = arith.constant 0 : index
      %c0_15 = arith.constant 0 : index
      %20 = vector.load %arg13[%c0_14, %c0_15] : memref<1x128xf32, #tpu.memory_space<vmem>>, vector<1x128xf32>
      tpu.vector_store %arg13[%c0_14, %c0_15], %19 {strides = array<i32>} : memref<1x128xf32, #tpu.memory_space<vmem>>, vector<1x128xf32>,
    } else {
    }
    %c0_7 = arith.constant 0 : index
    %c0_8 = arith.constant 0 : index
    %11 = vector.load %arg13[%c0_7, %c0_8] : memref<1x128xf32, #tpu.memory_space<vmem>>, vector<1x128xf32>
    %cst_9 = arith.constant dense<0.000000e+00> : vector<128xf32>
    %12 = vector.multi_reduction <add>, %7, %cst_9 [0] : vector<128x128xf32> to vector<128xf32>
    %13 = vector.shape_cast %12 : vector<128xf32> to vector<1x128xf32>
    %14 = arith.addf %11, %13 : vector<1x128xf32>
    %c0_10 = arith.constant 0 : index
    %c0_11 = arith.constant 0 : index
    %15 = vector.load %arg13[%c0_10, %c0_11] : memref<1x128xf32, #tpu.memory_space<vmem>>, vector<1x128xf32>
    tpu.vector_store %arg13[%c0_10, %c0_11], %14 {strides = array<i32>} : memref<1x128xf32, #tpu.memory_space<vmem>>, vector<1x128xf32>,
    %c1_i32 = arith.constant 1 : i32
    %16 = arith.cmpi eq, %arg1, %c1_i32 : i32
    %17 = arith.extui %16 : i1 to i32
    %c0_i32_12 = arith.constant 0 : i32
    %18 = arith.cmpi ne, %17, %c0_i32_12 : i32
    scf.if %18 {
      %c0_13 = arith.constant 0 : index
      %c0_14 = arith.constant 0 : index
      %19 = vector.load %arg13[%c0_13, %c0_14] : memref<1x128xf32, #tpu.memory_space<vmem>>, vector<1x128xf32>
      %cst_15 = arith.constant 3.906250e-03 : f32
      %20 = vector.broadcast %cst_15 : f32 to vector<1x128xf32>
      %21 = arith.mulf %19, %20 : vector<1x128xf32>
      %c0_16 = arith.constant 0 : index
      %c0_17 = arith.constant 0 : index
      %22 = vector.load %arg5[%c0_16, %c0_17] : memref<128x128xf32, #tpu.memory_space<vmem>>, vector<128x128xf32>
      %cst_18 = arith.constant dense<0.000000e+00> : vector<1x128xf32>
      %23 = tpu.matmul %21, %22, %cst_18 {dimension_numbers = #tpu.dot_dimension_numbers<[1], [0], [0], [1], [0, 0, 1, 1], [], []>} : vector<1x128xf32>, vector<128x128xf32>, vector<1x128xf32> -> vector<1x128xf32>
      %c0_19 = arith.constant 0 : index
      %c0_20 = arith.constant 0 : index
      %24 = vector.load %arg6[%c0_19, %c0_20] : memref<1x128xf32, #tpu.memory_space<vmem>>, vector<1x128xf32>
      %25 = arith.addf %23, %24 : vector<1x128xf32>
      %c0_21 = arith.constant 0 : index
      %c0_22 = arith.constant 0 : index
      %26 = vector.load %arg7[%c0_21, %c0_22] : memref<128x128xf32, #tpu.memory_space<vmem>>, vector<128x128xf32>
      %cst_23 = arith.constant dense<0.000000e+00> : vector<1x128xf32>
      %27 = tpu.matmul %25, %26, %cst_23 {dimension_numbers = #tpu.dot_dimension_numbers<[1], [0], [0], [1], [0, 0, 1, 1], [], []>} : vector<1x128xf32>, vector<128x128xf32>, vector<1x128xf32> -> vector<1x128xf32>
      %c0_24 = arith.constant 0 : index
      %c0_25 = arith.constant 0 : index
      %28 = vector.load %arg8[%c0_24, %c0_25] : memref<1x128xf32, #tpu.memory_space<vmem>>, vector<1x128xf32>
      %29 = arith.addf %27, %28 : vector<1x128xf32>
      %cst_26 = arith.constant 0.000000e+00 : f32
      %30 = vector.broadcast %cst_26 : f32 to vector<1x128xf32>
      %31 = arith.maximumf %29, %30 : vector<1x128xf32>
      %c0_27 = arith.constant 0 : index
      %c0_28 = arith.constant 0 : index
      %32 = vector.load %arg9[%c0_27, %c0_28] : memref<128x128xf32, #tpu.memory_space<vmem>>, vector<128x128xf32>
      %cst_29 = arith.constant dense<0.000000e+00> : vector<1x128xf32>
      %33 = tpu.matmul %31, %32, %cst_29 {dimension_numbers = #tpu.dot_dimension_numbers<[1], [0], [0], [1], [0, 0, 1, 1], [], []>} : vector<1x128xf32>, vector<128x128xf32>, vector<1x128xf32> -> vector<1x128xf32>
      %c0_30 = arith.constant 0 : index
      %c0_31 = arith.constant 0 : index
      %34 = vector.load %arg10[%c0_30, %c0_31] : memref<1x128xf32, #tpu.memory_space<vmem>>, vector<1x128xf32>
      %35 = arith.addf %33, %34 : vector<1x128xf32>
      %36 = vector.extract_strided_slice %25 {offsets = [0, 0], sizes = [1, 32], strides = [1, 1]} : vector<1x128xf32> to vector<1x32xf32>
      %37 = vector.shape_cast %36 : vector<1x32xf32> to vector<1x1x32xf32>
      %c0_32 = arith.constant 0 : index
      %c0_33 = arith.constant 0 : index
      %c0_34 = arith.constant 0 : index
      %38 = vector.load %arg11[%c0_32, %c0_33, %c0_34] : memref<1x1x32xf32, #tpu.memory_space<vmem>>, vector<1x1x32xf32>
      tpu.vector_store %arg11[%c0_32, %c0_33, %c0_34], %37 {strides = array<i32>} : memref<1x1x32xf32, #tpu.memory_space<vmem>>, vector<1x1x32xf32>,
      %39 = vector.extract_strided_slice %35 {offsets = [0, 0], sizes = [1, 16], strides = [1, 1]} : vector<1x128xf32> to vector<1x16xf32>
      %40 = vector.shape_cast %39 : vector<1x16xf32> to vector<1x1x16xf32>
      %c0_35 = arith.constant 0 : index
      %c0_36 = arith.constant 0 : index
      %c0_37 = arith.constant 0 : index
      %41 = vector.load %arg12[%c0_35, %c0_36, %c0_37] : memref<1x1x16xf32, #tpu.memory_space<vmem>>, vector<1x1x16xf32>
      tpu.vector_store %arg12[%c0_35, %c0_36, %c0_37], %40 {strides = array<i32>} : memref<1x1x16xf32, #tpu.memory_space<vmem>>, vector<1x1x16xf32>,
    } else {
    }
    return
  }
  func.func @transform_0(%arg0: i32, %arg1: i32) -> (i32, i32) {
    %c2_i32 = arith.constant 2 : i32
    %0 = arith.muli %arg0, %c2_i32 : i32
    %1 = arith.addi %0, %arg1 : i32
    %c0_i32 = arith.constant 0 : i32
    %c0_i32_0 = arith.constant 0 : i32
    return %1, %c0_i32 : i32, i32
  }
  func.func @transform_1(%arg0: i32, %arg1: i32) -> (i32, i32) {
    %c0_i32 = arith.constant 0 : i32
    %c0_i32_0 = arith.constant 0 : i32
    %c0_i32_1 = arith.constant 0 : i32
    return %c0_i32, %c0_i32_0 : i32, i32
  }
  func.func @transform_2(%arg0: i32, %arg1: i32) -> (i32, i32) {
    %c0_i32 = arith.constant 0 : i32
    %c0_i32_0 = arith.constant 0 : i32
    %c0_i32_1 = arith.constant 0 : i32
    return %c0_i32, %c0_i32_0 : i32, i32
  }
  func.func @transform_3(%arg0: i32, %arg1: i32) -> (i32, i32) {
    %c0_i32 = arith.constant 0 : i32
    %c0_i32_0 = arith.constant 0 : i32
    %c0_i32_1 = arith.constant 0 : i32
    return %c0_i32, %c0_i32_0 : i32, i32
  }
  func.func @transform_4(%arg0: i32, %arg1: i32) -> (i32, i32) {
    %c0_i32 = arith.constant 0 : i32
    %c0_i32_0 = arith.constant 0 : i32
    %c0_i32_1 = arith.constant 0 : i32
    return %c0_i32, %c0_i32_0 : i32, i32
  }
  func.func @transform_5(%arg0: i32, %arg1: i32) -> (i32, i32) {
    %c0_i32 = arith.constant 0 : i32
    %c0_i32_0 = arith.constant 0 : i32
    %c0_i32_1 = arith.constant 0 : i32
    return %c0_i32, %c0_i32_0 : i32, i32
  }
  func.func @transform_6(%arg0: i32, %arg1: i32) -> (i32, i32) {
    %c0_i32 = arith.constant 0 : i32
    %c0_i32_0 = arith.constant 0 : i32
    %c0_i32_1 = arith.constant 0 : i32
    return %c0_i32, %c0_i32_0 : i32, i32
  }
  func.func @transform_7(%arg0: i32, %arg1: i32) -> (i32, i32) {
    %c0_i32 = arith.constant 0 : i32
    %c0_i32_0 = arith.constant 0 : i32
    %c0_i32_1 = arith.constant 0 : i32
    return %c0_i32, %c0_i32_0 : i32, i32
  }
  func.func @transform_8(%arg0: i32, %arg1: i32) -> (i32, i32) {
    %c0_i32 = arith.constant 0 : i32
    %c0_i32_0 = arith.constant 0 : i32
    %c0_i32_1 = arith.constant 0 : i32
    return %c0_i32, %c0_i32_0 : i32, i32
  }
  func.func @transform_9(%arg0: i32, %arg1: i32) -> (i32, i32, i32) {
    %c0_i32 = arith.constant 0 : i32
    %c0_i32_0 = arith.constant 0 : i32
    %c0_i32_1 = arith.constant 0 : i32
    return %arg0, %c0_i32, %c0_i32_0 : i32, i32, i32
  }
  func.func @transform_10(%arg0: i32, %arg1: i32) -> (i32, i32, i32) {
    %c0_i32 = arith.constant 0 : i32
    %c0_i32_0 = arith.constant 0 : i32
    %c0_i32_1 = arith.constant 0 : i32
    return %arg0, %c0_i32, %c0_i32_0 : i32, i32, i32
  }
}

</mosaic_0001>

<llo_original>
// kernel: contrastive_forward.1
$region0: #{contrastive_forward.1}
  #allocation0 [shape = 'u32[]', space=smem, size = 0x4, offset = 0x4, fixed_abs, tag = 'smem constant byte address 0x4 - core index']
  #allocation1 [shape = 'u32[144,128]{1,0:T(1,128)}', space=vmem, size = 0x12000, scoped, tag = 'internal scratch']
  #allocation2 [shape = 'f32[1,128]{1,0:T(1,128)}', space=vmem, size = 0x200, scoped, tag = 'scratch operand']
  %s0 = inlined_call_operand.vmem [shape: bf16[512,36], index: 0, kind: input, shape index: {}]
  %s1 = inlined_call_operand.vmem [shape: bf16[36,128], index: 1, kind: input, shape index: {}]
  %s2 = inlined_call_operand.vmem [shape: f32[1,128], index: 2, kind: input, shape index: {}]
  %s3 = inlined_call_operand.vmem [shape: f32[128,128], index: 3, kind: input, shape index: {}]
  %s4 = inlined_call_operand.vmem [shape: f32[1,128], index: 4, kind: input, shape index: {}]
  %s5 = inlined_call_operand.vmem [shape: f32[128,128], index: 5, kind: input, shape index: {}]
  %s6 = inlined_call_operand.vmem [shape: f32[1,128], index: 6, kind: input, shape index: {}]
  %s7 = inlined_call_operand.vmem [shape: f32[128,128], index: 7, kind: input, shape index: {}]
  %s8 = inlined_call_operand.vmem [shape: f32[1,128], index: 8, kind: input, shape index: {}]
  %s9 = inlined_call_operand.hbm [shape: f32[2,1,32], index: 9, kind: output, shape index: {0}]
  %s10 = inlined_call_operand.hbm [shape: f32[2,1,16], index: 10, kind: output, shape index: {1}]
  %11 = xla_tuple %s9, %s10
  %s12 = sld [smem:[#allocation0]]
  $region85: #{contrastive_forward.1} parent=0
    _
  %s14 = ssub.s32 1, %s12
  %s15 = scalar_select 0, %s14, %s12
  $region1: #{contrastive_forward.1} parent=0
    #allocation3 [shape = 'u8[1024]{0}', space=vmem, size = 0x400, scoped, tag = 'output window, operand 0']
    #allocation4 [shape = 's32[2]{0}', space=sflag, size = 0x8, scoped, tag = 'scoped memory for contrastive_forward.1']
    #allocation5 [shape = 'u8[1024]{0}', space=vmem, size = 0x400, scoped, tag = 'output window, operand 1']
    #allocation6 [shape = 's32[2]{0}', space=sflag, size = 0x8, scoped, tag = 'scoped memory for contrastive_forward.1']
    %16 = vsyncpa [#allocation4], 0
    %s17 = scalar_lea.sflag [#allocation4], 1
    %18 = vsyncpa %s17, 0
    %19 = vsyncpa [#allocation6], 0
    %s20 = scalar_lea.sflag [#allocation6], 1
    %21 = vsyncpa %s20, 0
    loop: start=0, step=1, limit=6
    $region2: #{contrastive_forward.1} parent=1 // loop_pre_header
      _
    $region3: #{contrastive_forward.1} parent=1 // loop_header
      %s23 = sphi 0, %s27
      %p24 = scmp.ge.s32.totalorder %s23, 6
      %s30 = sphi 0, %s42
      %s31 = sphi 0, %s38
      %s32 = sphi 0, %s30
      %s33 = sphi 0, %s31
      %s34 = sphi 0, %s32
      %s35 = sphi 0, %s33
      %s49 = sphi 0, %s51
      %s52 = sphi 0, %s49
      %s53 = sphi 0, %s52
      %s69 = sphi 0, %s53
      %s73 = sphi 0, %s73
      %s75 = sphi 0, %s73
      %s76 = sphi 0, %s75
      %s90 = sphi 0, %s76
      %s94 = sphi 0, %s94
      %s96 = sphi 0, %s94
      %s97 = sphi 0, %s96
      %s111 = sphi 0, %s97
      %s115 = sphi 0, %s115
      %s117 = sphi 0, %s115
      %s118 = sphi 0, %s117
      %s132 = sphi 0, %s118
      %s136 = sphi 0, %s136
      %s138 = sphi 0, %s136
      %s139 = sphi 0, %s138
      %s153 = sphi 0, %s139
      %s157 = sphi 0, %s157
      %s159 = sphi 0, %s157
      %s160 = sphi 0, %s159
      %s174 = sphi 0, %s160
      %s178 = sphi 0, %s178
      %s180 = sphi 0, %s178
      %s181 = sphi 0, %s180
      %s195 = sphi 0, %s181
      %s199 = sphi 0, %s199
      %s201 = sphi 0, %s199
      %s202 = sphi 0, %s201
      %s216 = sphi 0, %s202
      %s220 = sphi 0, %s220
      %s222 = sphi 0, %s220
      %s223 = sphi 0, %s222
      %s237 = sphi 0, %s223
      %s243 = sphi 0, %s245
      %s246 = sphi 0, %s243
      %s247 = sphi 0, %s246
      %s263 = sphi 0, %s247
      %s269 = sphi 0, %s271
      %s272 = sphi 0, %s269
      %s273 = sphi 0, %s272
      %s289 = sphi 0, %s273
    $region4: #{contrastive_forward.1} parent=1 // loop_header_branch
      %26 = sbr.rel (%p24) target = $region8
    $region5: #{contrastive_forward.1} parent=1 // loop_body
      %s28 = ssub.s32 %s23, 1
      %s29 = ssub.s32 %s23, 2
      %s36 = sadd.s32 1, %s31
      %p37 = scmp.ge.s32.totalorder %s36, 2
      %s38 = scalar_select %p37, 0, %s36
      %s39 = sadd.s32 1, %s30
      %s40 = scalar_select %p37, %s39, %s30
      %p41 = scmp.ge.s32.totalorder %s40, 2
      %s42 = scalar_select %p41, 0, %s40
      %s43 = smul.u32 %s30, 2
      %s44 = sadd.s32 %s43, %s31
      %s45 = smul.u32 %s42, 2
      %s46 = sadd.s32 %s45, %s38
      %s47 = ssub.s32 %s44, %s46
      %p48 = scmp.eq.s32.totalorder %s47, 0
      %s50 = sadd.s32 %s49, 1
      %s51 = scalar_select %p48, %s49, %s50
      %p54 = pneg %p48
      %p55 = scmp.eq.s32.totalorder %s23, 3
      %p56 = por %p54, %p55
      %p57 = scmp.ne.s32.totalorder %s49, %s52
      %p58 = scmp.eq.s32.totalorder %s23, 0
      %p59 = por %p57, %p58
      %p60 = scmp.ne.s32.totalorder %s49, %s52
      %p61 = scmp.eq.s32.totalorder %s28, 3
      %p62 = por %p60, %p61
      %p63 = scmp.ne.s32.totalorder %s52, %s53
      %p64 = scmp.eq.s32.totalorder %s28, 0
      %p65 = por %p63, %p64
      %p66 = scmp.ne.s32.totalorder %s52, %s53
      %p67 = scmp.eq.s32.totalorder %s29, 3
      %p68 = por %p66, %p67
      %p70 = scmp.ne.s32.totalorder %s53, %s69
      %p71 = scmp.eq.s32.totalorder %s29, 0
      %p72 = por %p70, %p71
      %s74 = sadd.s32 %s73, 1
      %p77 = scmp.eq.s32.totalorder %s23, 3
      %p78 = scmp.ne.s32.totalorder %s73, %s75
      %p79 = scmp.eq.s32.totalorder %s23, 0
      %p80 = por %p78, %p79
      %p81 = scmp.ne.s32.totalorder %s73, %s75
      %p82 = scmp.eq.s32.totalorder %s28, 3
      %p83 = por %p81, %p82
      %p84 = scmp.ne.s32.totalorder %s75, %s76
      %p85 = scmp.eq.s32.totalorder %s28, 0
      %p86 = por %p84, %p85
      %p87 = scmp.ne.s32.totalorder %s75, %s76
      %p88 = scmp.eq.s32.totalorder %s29, 3
      %p89 = por %p87, %p88
      %p91 = scmp.ne.s32.totalorder %s76, %s90
      %p92 = scmp.eq.s32.totalorder %s29, 0
      %p93 = por %p91, %p92
      %s95 = sadd.s32 %s94, 1
      %p98 = scmp.eq.s32.totalorder %s23, 3
      %p99 = scmp.ne.s32.totalorder %s94, %s96
      %p100 = scmp.eq.s32.totalorder %s23, 0
      %p101 = por %p99, %p100
      %p102 = scmp.ne.s32.totalorder %s94, %s96
      %p103 = scmp.eq.s32.totalorder %s28, 3
      %p104 = por %p102, %p103
      %p105 = scmp.ne.s32.totalorder %s96, %s97
      %p106 = scmp.eq.s32.totalorder %s28, 0
      %p107 = por %p105, %p106
      %p108 = scmp.ne.s32.totalorder %s96, %s97
      %p109 = scmp.eq.s32.totalorder %s29, 3
      %p110 = por %p108, %p109
      %p112 = scmp.ne.s32.totalorder %s97, %s111
      %p113 = scmp.eq.s32.totalorder %s29, 0
      %p114 = por %p112, %p113
      %s116 = sadd.s32 %s115, 1
      %p119 = scmp.eq.s32.totalorder %s23, 3
      %p120 = scmp.ne.s32.totalorder %s115, %s117
      %p121 = scmp.eq.s32.totalorder %s23, 0
      %p122 = por %p120, %p121
      %p123 = scmp.ne.s32.totalorder %s115, %s117
      %p124 = scmp.eq.s32.totalorder %s28, 3
      %p125 = por %p123, %p124
      %p126 = scmp.ne.s32.totalorder %s117, %s118
      %p127 = scmp.eq.s32.totalorder %s28, 0
      %p128 = por %p126, %p127
      %p129 = scmp.ne.s32.totalorder %s117, %s118
      %p130 = scmp.eq.s32.totalorder %s29, 3
      %p131 = por %p129, %p130
      %p133 = scmp.ne.s32.totalorder %s118, %s132
      %p134 = scmp.eq.s32.totalorder %s29, 0
      %p135 = por %p133, %p134
      %s137 = sadd.s32 %s136, 1
      %p140 = scmp.eq.s32.totalorder %s23, 3
      %p141 = scmp.ne.s32.totalorder %s136, %s138
      %p142 = scmp.eq.s32.totalorder %s23, 0
      %p143 = por %p141, %p142
      %p144 = scmp.ne.s32.totalorder %s136, %s138
      %p145 = scmp.eq.s32.totalorder %s28, 3
      %p146 = por %p144, %p145
      %p147 = scmp.ne.s32.totalorder %s138, %s139
      %p148 = scmp.eq.s32.totalorder %s28, 0
      %p149 = por %p147, %p148
      %p150 = scmp.ne.s32.totalorder %s138, %s139
      %p151 = scmp.eq.s32.totalorder %s29, 3
      %p152 = por %p150, %p151
      %p154 = scmp.ne.s32.totalorder %s139, %s153
      %p155 = scmp.eq.s32.totalorder %s29, 0
      %p156 = por %p154, %p155
      %s158 = sadd.s32 %s157, 1
      %p161 = scmp.eq.s32.totalorder %s23, 3
      %p162 = scmp.ne.s32.totalorder %s157, %s159
      %p163 = scmp.eq.s32.totalorder %s23, 0
      %p164 = por %p162, %p163
      %p165 = scmp.ne.s32.totalorder %s157, %s159
      %p166 = scmp.eq.s32.totalorder %s28, 3
      %p167 = por %p165, %p166
      %p168 = scmp.ne.s32.totalorder %s159, %s160
      %p169 = scmp.eq.s32.totalorder %s28, 0
      %p170 = por %p168, %p169
      %p171 = scmp.ne.s32.totalorder %s159, %s160
      %p172 = scmp.eq.s32.totalorder %s29, 3
      %p173 = por %p171, %p172
      %p175 = scmp.ne.s32.totalorder %s160, %s174
      %p176 = scmp.eq.s32.totalorder %s29, 0
      %p177 = por %p175, %p176
      %s179 = sadd.s32 %s178, 1
      %p182 = scmp.eq.s32.totalorder %s23, 3
      %p183 = scmp.ne.s32.totalorder %s178, %s180
      %p184 = scmp.eq.s32.totalorder %s23, 0
      %p185 = por %p183, %p184
      %p186 = scmp.ne.s32.totalorder %s178, %s180
      %p187 = scmp.eq.s32.totalorder %s28, 3
      %p188 = por %p186, %p187
      %p189 = scmp.ne.s32.totalorder %s180, %s181
      %p190 = scmp.eq.s32.totalorder %s28, 0
      %p191 = por %p189, %p190
      %p192 = scmp.ne.s32.totalorder %s180, %s181
      %p193 = scmp.eq.s32.totalorder %s29, 3
      %p194 = por %p192, %p193
      %p196 = scmp.ne.s32.totalorder %s181, %s195
      %p197 = scmp.eq.s32.totalorder %s29, 0
      %p198 = por %p196, %p197
      %s200 = sadd.s32 %s199, 1
      %p203 = scmp.eq.s32.totalorder %s23, 3
      %p204 = scmp.ne.s32.totalorder %s199, %s201
      %p205 = scmp.eq.s32.totalorder %s23, 0
      %p206 = por %p204, %p205
      %p207 = scmp.ne.s32.totalorder %s199, %s201
      %p208 = scmp.eq.s32.totalorder %s28, 3
      %p209 = por %p207, %p208
      %p210 = scmp.ne.s32.totalorder %s201, %s202
      %p211 = scmp.eq.s32.totalorder %s28, 0
      %p212 = por %p210, %p211
      %p213 = scmp.ne.s32.totalorder %s201, %s202
      %p214 = scmp.eq.s32.totalorder %s29, 3
      %p215 = por %p213, %p214
      %p217 = scmp.ne.s32.totalorder %s202, %s216
      %p218 = scmp.eq.s32.totalorder %s29, 0
      %p219 = por %p217, %p218
      %s221 = sadd.s32 %s220, 1
      %p224 = scmp.eq.s32.totalorder %s23, 3
      %p225 = scmp.ne.s32.totalorder %s220, %s222
      %p226 = scmp.eq.s32.totalorder %s23, 0
      %p227 = por %p225, %p226
      %p228 = scmp.ne.s32.totalorder %s220, %s222
      %p229 = scmp.eq.s32.totalorder %s28, 3
      %p230 = por %p228, %p229
      %p231 = scmp.ne.s32.totalorder %s222, %s223
      %p232 = scmp.eq.s32.totalorder %s28, 0
      %p233 = por %p231, %p232
      %p234 = scmp.ne.s32.totalorder %s222, %s223
      %p235 = scmp.eq.s32.totalorder %s29, 3
      %p236 = por %p234, %p235
      %p238 = scmp.ne.s32.totalorder %s223, %s237
      %p239 = scmp.eq.s32.totalorder %s29, 0
      %p240 = por %p238, %p239
      %s241 = ssub.s32 %s30, %s42
      %p242 = scmp.eq.s32.totalorder %s241, 0
      %s244 = sadd.s32 %s243, 1
      %s245 = scalar_select %p242, %s243, %s244
      %p248 = pneg %p242
      %p249 = scmp.eq.s32.totalorder %s23, 3
      %p250 = por %p248, %p249
      %p251 = scmp.ne.s32.totalorder %s243, %s246
      %p252 = scmp.eq.s32.totalorder %s23, 0
      %p253 = por %p251, %p252
      %p254 = scmp.ne.s32.totalorder %s243, %s246
      %p255 = scmp.eq.s32.totalorder %s28, 3
      %p256 = por %p254, %p255
      %p257 = scmp.ne.s32.totalorder %s246, %s247
      %p258 = scmp.eq.s32.totalorder %s28, 0
      %p259 = por %p257, %p258
      %p260 = scmp.ne.s32.totalorder %s246, %s247
      %p261 = scmp.eq.s32.totalorder %s29, 3
      %p262 = por %p260, %p261
      %p264 = scmp.ne.s32.totalorder %s247, %s263
      %p265 = scmp.eq.s32.totalorder %s29, 0
      %p266 = por %p264, %p265
      %s267 = ssub.s32 %s30, %s42
      %p268 = scmp.eq.s32.totalorder %s267, 0
      %s270 = sadd.s32 %s269, 1
      %s271 = scalar_select %p268, %s269, %s270
      %p274 = pneg %p268
      %p275 = scmp.eq.s32.totalorder %s23, 3
      %p276 = por %p274, %p275
      %p277 = scmp.ne.s32.totalorder %s269, %s272
      %p278 = scmp.eq.s32.totalorder %s23, 0
      %p279 = por %p277, %p278
      %p280 = scmp.ne.s32.totalorder %s269, %s272
      %p281 = scmp.eq.s32.totalorder %s28, 3
      %p282 = por %p280, %p281
      %p283 = scmp.ne.s32.totalorder %s272, %s273
      %p284 = scmp.eq.s32.totalorder %s28, 0
      %p285 = por %p283, %p284
      %p286 = scmp.ne.s32.totalorder %s272, %s273
      %p287 = scmp.eq.s32.totalorder %s29, 3
      %p288 = por %p286, %p287
      %p290 = scmp.ne.s32.totalorder %s273, %s289
      %p291 = scmp.eq.s32.totalorder %s29, 0
      %p292 = por %p290, %p291
      %p293 = scmp.le.s32.totalorder 1, %s23
      %p294 = scmp.lt.s32.totalorder %s23, 5
      %p295 = pnand %p293, %p294
      %p296 = pneg %p295
      // Predicated region
      $region9: #{contrastive_forward.1} parent=5 // pred_check
        _
      $region10: #{contrastive_forward.1} parent=5 // pred_check_branch
        %298 = sbr.rel (%p295) target = $region12
      $region11: #{contrastive_forward.1} parent=5 // pred_region
        %s299 = ssub.s32 %s23, 1
        // Predicated region
        $region13: #{contrastive_forward.1} parent=11 // pred_check
          %p300 = pneg %p86
        $region14: #{contrastive_forward.1} parent=11 // pred_check_branch
          %302 = sbr.rel (%p300) target = $region16
        $region15: #{contrastive_forward.1} parent=11 // pred_region
          _
        $region16: #{contrastive_forward.1} parent=11 // pred_fallthru
          _
        // Predicated region
        $region17: #{contrastive_forward.1} parent=11 // pred_check
          %p303 = pneg %p107
        $region18: #{contrastive_forward.1} parent=11 // pred_check_branch
          %305 = sbr.rel (%p303) target = $region20
        $region19: #{contrastive_forward.1} parent=11 // pred_region
          _
        $region20: #{contrastive_forward.1} parent=11 // pred_fallthru
          _
        // Predicated region
        $region21: #{contrastive_forward.1} parent=11 // pred_check
          %p306 = pneg %p128
        $region22: #{contrastive_forward.1} parent=11 // pred_check_branch
          %308 = sbr.rel (%p306) target = $region24
        $region23: #{contrastive_forward.1} parent=11 // pred_region
          _
        $region24: #{contrastive_forward.1} parent=11 // pred_fallthru
          _
        // Predicated region
        $region25: #{contrastive_forward.1} parent=11 // pred_check
          %p309 = pneg %p149
        $region26: #{contrastive_forward.1} parent=11 // pred_check_branch
          %311 = sbr.rel (%p309) target = $region28
        $region27: #{contrastive_forward.1} parent=11 // pred_region
          _
        $region28: #{contrastive_forward.1} parent=11 // pred_fallthru
          _
        // Predicated region
        $region29: #{contrastive_forward.1} parent=11 // pred_check
          %p312 = pneg %p170
        $region30: #{contrastive_forward.1} parent=11 // pred_check_branch
          %314 = sbr.rel (%p312) target = $region32
        $region31: #{contrastive_forward.1} parent=11 // pred_region
          _
        $region32: #{contrastive_forward.1} parent=11 // pred_fallthru
          _
        // Predicated region
        $region33: #{contrastive_forward.1} parent=11 // pred_check
          %p315 = pneg %p191
        $region34: #{contrastive_forward.1} parent=11 // pred_check_branch
          %317 = sbr.rel (%p315) target = $region36
        $region35: #{contrastive_forward.1} parent=11 // pred_region
          _
        $region36: #{contrastive_forward.1} parent=11 // pred_fallthru
          _
        // Predicated region
        $region37: #{contrastive_forward.1} parent=11 // pred_check
          %p318 = pneg %p212
        $region38: #{contrastive_forward.1} parent=11 // pred_check_branch
          %320 = sbr.rel (%p318) target = $region40
        $region39: #{contrastive_forward.1} parent=11 // pred_region
          _
        $region40: #{contrastive_forward.1} parent=11 // pred_fallthru
          _
        // Predicated region
        $region41: #{contrastive_forward.1} parent=11 // pred_check
          %p321 = pneg %p233
        $region42: #{contrastive_forward.1} parent=11 // pred_check_branch
          %323 = sbr.rel (%p321) target = $region44
        $region43: #{contrastive_forward.1} parent=11 // pred_region
          _
        $region44: #{contrastive_forward.1} parent=11 // pred_fallthru
          _
      $region12: #{contrastive_forward.1} parent=5 // pred_fallthru
        _
      %p324 = scmp.lt.s32.totalorder %s23, 4
      // Predicated region
      $region45: #{contrastive_forward.1} parent=5 // pred_check
        %p325 = pneg %p324
      $region46: #{contrastive_forward.1} parent=5 // pred_check_branch
        %327 = sbr.rel (%p325) target = $region48
      $region47: #{contrastive_forward.1} parent=5 // pred_region
        // Predicated region
        $region49: #{contrastive_forward.1} parent=47 // pred_check
          %p328 = pneg %p59
        $region50: #{contrastive_forward.1} parent=47 // pred_check_branch
          %330 = sbr.rel (%p328) target = $region52
        $region51: #{contrastive_forward.1} parent=47 // pred_region
          %s331 = smul.u32 %s30, 2
          %s332 = sadd.s32 %s331, %s31
          %s333 = smul.u32 16, %s332
          %p334 = scmp.lt.s32.totalorder %s333, 63
          %s335 = scalar_select %p334, %s333, 63
          %s336 = smul.addr %s335, 4
          %s337 = scalar_lea.vmem %s0, %s336
          %s338 = smul.u32 %s30, 2
          %s339 = sadd.s32 %s338, %s31
          %s340 = smul.u32 16, %s339
        $region52: #{contrastive_forward.1} parent=47 // pred_fallthru
          _
      $region48: #{contrastive_forward.1} parent=5 // pred_fallthru
        _
      %p341 = scmp.le.s32.totalorder 1, %s23
      %p342 = scmp.lt.s32.totalorder %s23, 5
      %p343 = pnand %p341, %p342
      %p344 = pneg %p343
      // Predicated region
      $region53: #{contrastive_forward.1} parent=5 // pred_check
        _
      $region54: #{contrastive_forward.1} parent=5 // pred_check_branch
        %346 = sbr.rel (%p343) target = $region56
      $region55: #{contrastive_forward.1} parent=5 // pred_region
        %s347 = ssub.s32 %s23, 1
        %s348 = smul.u32 %s32, 2
        %s349 = sadd.s32 %s348, %s33
        %s350 = smul.u32 16, %s349
        %p351 = scmp.lt.s32.totalorder %s350, 63
        %s352 = scalar_select %p351, %s350, 63
        %s353 = smul.addr %s352, 4
        %s354 = scalar_lea.vmem %s0, %s353
        %p355 = pneg %p65
        %p356 = pneg %p62
        %p357 = pneg %p86
        %p358 = pneg %p83
        %p359 = pneg %p107
        %p360 = pneg %p104
        %p361 = pneg %p128
        %p362 = pneg %p125
        %p363 = pneg %p149
        %p364 = pneg %p146
        %p365 = pneg %p170
        %p366 = pneg %p167
        %p367 = pneg %p191
        %p368 = pneg %p188
        %p369 = pneg %p212
        %p370 = pneg %p209
        %p371 = pneg %p233
        %p372 = pneg %p230
        %p373 = pneg %p259
        %p374 = pneg %p256
        %s375 = sand.u32 %s246, 1
        %s376 = scalar_lea.sflag [#allocation4], %s375
        %s377 = sand.u32 %s246, 1
        %s378 = scalar_lea.vmem [#allocation3], %s377
        %p379 = pneg %p285
        %p380 = pneg %p282
        %s381 = sand.u32 %s272, 1
        %s382 = scalar_lea.sflag [#allocation6], %s381
        %s383 = sand.u32 %s272, 1
        %s384 = scalar_lea.vmem [#allocation5], %s383
        %s385 = smul.u32 %s32, 2
        %s386 = sadd.s32 %s385, %s33
        %s387 = smul.u32 16, %s386
        %p388 = scmp.lt.s32.totalorder %s387, 63
        %s389 = scalar_select %p388, %s387, 63
        %s390 = smul.addr %s389, 4
        %s391 = scalar_lea.vmem %s0, %s390
        %s392 = smul.u32 %s32, 2
        %s393 = sadd.s32 %s392, %s33
        %s394 = smul.u32 16, %s393
        %v396 = vld [vmem:[%s391] sm:$0xf]
        %v397 = vld [vmem:[%s391 + $0x4] sm:$0xf]
        %v398 = vld [vmem:[%s391 + $0x8] sm:$0xf]
        %v399 = vld [vmem:[%s391 + $0xc] sm:$0xf]
        %v400 = vld [vmem:[%s391 + $0x10] sm:$0xf]
        %v401 = vld [vmem:[%s391 + $0x14] sm:$0xf]
        %v402 = vld [vmem:[%s391 + $0x18] sm:$0xf]
        %v403 = vld [vmem:[%s391 + $0x1c] sm:$0xf]
        %v404 = vld [vmem:[%s391 + $0x20] sm:$0xf]
        %v405 = vld [vmem:[%s391 + $0x24] sm:$0xf]
        %v406 = vld [vmem:[%s391 + $0x28] sm:$0xf]
        %v407 = vld [vmem:[%s391 + $0x2c] sm:$0xf]
        %v408 = vld [vmem:[%s391 + $0x30] sm:$0xf]
        %v409 = vld [vmem:[%s391 + $0x34] sm:$0xf]
        %v410 = vld [vmem:[%s391 + $0x38] sm:$0xf]
        %v411 = vld [vmem:[%s391 + $0x3c] sm:$0xf]
        %v412 = vld [vmem:[%s1] sm:$0xf]
        %v413 = vld [vmem:[%s1 + $0x4] sm:$0xf]
        %v414 = vld [vmem:[%s1 + $0x8] sm:$0xf]
        %v415 = vld [vmem:[%s1 + $0xc] sm:$0xf]
        %v416 = vld [vmem:[%s1 + $0x10] sm:$0x3]
        %v417 = vld [vmem:[%s2] sm:$0x1]
        %v419 = vlaneseq
        %v420 = vshrl.u32 %v419, 7
        %v421 = vsub.s32 0, %v420
        %v422 = vrot.slane %v417, %v421
        %v440 = vunpack.c.l.b16 %v396
        %v441 = vunpack.c.l.b16 %v397
        %v442 = vunpack.c.l.b16 %v398
        %v443 = vunpack.c.l.b16 %v399
        %v444 = vunpack.c.l.b16 %v400
        %v445 = vunpack.c.l.b16 %v401
        %v446 = vunpack.c.l.b16 %v402
        %v447 = vunpack.c.l.b16 %v403
        %v448 = vunpack.c.l.b16 %v404
        %v449 = vunpack.c.l.b16 %v405
        %v450 = vunpack.c.l.b16 %v406
        %v451 = vunpack.c.l.b16 %v407
        %v452 = vunpack.c.l.b16 %v408
        %v453 = vunpack.c.l.b16 %v409
        %v454 = vunpack.c.l.b16 %v410
        %v455 = vunpack.c.l.b16 %v411
        %v456 = vpack.c.b16 %v441, %v440
        %v457 = vpack.c.b16 %v443, %v442
        %v458 = vpack.c.b16 %v445, %v444
        %v459 = vpack.c.b16 %v447, %v446
        %v460 = vpack.c.b16 %v449, %v448
        %v461 = vpack.c.b16 %v451, %v450
        %v462 = vpack.c.b16 %v453, %v452
        %v463 = vpack.c.b16 %v455, %v454
        %v469 = vunpack.c.l.b16 %v412
        %v470 = vunpack.c.l.b16 %v413
        %v471 = vunpack.c.l.b16 %v414
        %v472 = vunpack.c.l.b16 %v415
        %v473 = vunpack.c.l.b16 %v416
        %v474 = vpack.c.b16 %v470, %v469
        %v475 = vpack.c.b16 %v472, %v471
        %v476 = vpack.c.b16 %v473, %v473
        %vm479 = vcmask 293888
        %v481 = vsel %vm479, %v456, 0
        %v484 = vsel %vm479, %v457, 0
        %v487 = vsel %vm479, %v458, 0
        %v490 = vsel %vm479, %v459, 0
        %v493 = vsel %vm479, %v460, 0
        %v496 = vsel %vm479, %v461, 0
        %v499 = vsel %vm479, %v462, 0
        %v502 = vsel %vm479, %v463, 0
        %vm504 = vcmask 1041408
        %v506 = vsel %vm504, %v476, 0
        %508 = vmatprep.subr.bf16.mxu0 0
        %509 = vmatpush1.bf16.msra.mxu0 %v474
        %510 = vmatprep.subr.bf16.mxu0 0
        %511 = vmatpush1.bf16.msra.mxu0 %v475
        %512 = vmatprep.subr.bf16.mxu0 0
        %513 = vmatpush1.bf16.msra.mxu0 %v506
        %514 = vmatprep.subr.bf16.mxu0 0
        %515 = vmatpush1.bf16.msra.mxu0 0
        %516 = vmatprep.subr.bf16.mxu0 0
        %517 = vmatpush1.bf16.msra.mxu0 0
        %518 = vmatprep.subr.bf16.mxu0 0
        %519 = vmatpush1.bf16.msra.mxu0 0
        %520 = vmatprep.subr.bf16.mxu0 0
        %521 = vmatpush1.bf16.msra.mxu0 0
        %522 = vmatprep.subr.bf16.mxu0 0
        %523 = vmatpush1.bf16.msra.mxu0 0
        %524 = vmatprep.subr.bf16.mxu0 0
        %525 = vmatpush1.bf16.msra.mxu0 0
        %526 = vmatprep.subr.bf16.mxu0 0
        %527 = vmatpush1.bf16.msra.mxu0 0
        %528 = vmatprep.subr.bf16.mxu0 0
        %529 = vmatpush1.bf16.msra.mxu0 0
        %530 = vmatprep.subr.bf16.mxu0 0
        %531 = vmatpush1.bf16.msra.mxu0 0
        %532 = vmatprep.subr.bf16.mxu0 0
        %533 = vmatpush1.bf16.msra.mxu0 0
        %534 = vmatprep.subr.bf16.mxu0 0
        %535 = vmatpush1.bf16.msra.mxu0 0
        %536 = vmatprep.subr.bf16.mxu0 0
        %537 = vmatpush1.bf16.msra.mxu0 0
        %538 = vmatprep.subr.bf16.mxu0 0
        %539 = vmatpush1.bf16.msra.mxu0 0
        %540 = vmatprep.mubr.bf16.mxu0 0
        %541 = vmatmul.mubr.bf16.gmra.mrb[0].mxu0 %v481
        %v542 = vpop.f32.mrb[0].mxu0
        %v543 = vadd.f32 %v422, %v542
        %v544 = vpop.f32.mrb[0].mxu0
        %v545 = vpop.f32.mrb[0].mxu0
        %v546 = vadd.f32 %v422, %v545
        %v547 = vpop.f32.mrb[0].mxu0
        %548 = vmatprep.mubr.bf16.mxu0 0
        %549 = vmatmul.mubr.bf16.gmra.mrb[0].mxu0 %v484
        %v550 = vpop.f32.mrb[0].mxu0
        %v551 = vadd.f32 %v422, %v550
        %v552 = vpop.f32.mrb[0].mxu0
        %v553 = vpop.f32.mrb[0].mxu0
        %v554 = vadd.f32 %v422, %v553
        %v555 = vpop.f32.mrb[0].mxu0
        %556 = vmatprep.mubr.bf16.mxu0 0
        %557 = vmatmul.mubr.bf16.gmra.mrb[0].mxu0 %v487
        %v558 = vpop.f32.mrb[0].mxu0
        %v559 = vadd.f32 %v422, %v558
        %v560 = vpop.f32.mrb[0].mxu0
        %v561 = vpop.f32.mrb[0].mxu0
        %v562 = vadd.f32 %v422, %v561
        %v563 = vpop.f32.mrb[0].mxu0
        %564 = vmatprep.mubr.bf16.mxu0 0
        %565 = vmatmul.mubr.bf16.gmra.mrb[0].mxu0 %v490
        %v566 = vpop.f32.mrb[0].mxu0
        %v567 = vadd.f32 %v422, %v566
        %v568 = vpop.f32.mrb[0].mxu0
        %v569 = vpop.f32.mrb[0].mxu0
        %v570 = vadd.f32 %v422, %v569
        %v571 = vpop.f32.mrb[0].mxu0
        %572 = vmatprep.mubr.bf16.mxu0 0
        %573 = vmatmul.mubr.bf16.gmra.mrb[0].mxu0 %v493
        %v574 = vpop.f32.mrb[0].mxu0
        %v575 = vadd.f32 %v422, %v574
        %v576 = vpop.f32.mrb[0].mxu0
        %v577 = vpop.f32.mrb[0].mxu0
        %v578 = vadd.f32 %v422, %v577
        %v579 = vpop.f32.mrb[0].mxu0
        %580 = vmatprep.mubr.bf16.mxu0 0
        %581 = vmatmul.mubr.bf16.gmra.mrb[0].mxu0 %v496
        %v582 = vpop.f32.mrb[0].mxu0
        %v583 = vadd.f32 %v422, %v582
        %v584 = vpop.f32.mrb[0].mxu0
        %v585 = vpop.f32.mrb[0].mxu0
        %v586 = vadd.f32 %v422, %v585
        %v587 = vpop.f32.mrb[0].mxu0
        %588 = vmatprep.mubr.bf16.mxu0 0
        %589 = vmatmul.mubr.bf16.gmra.mrb[0].mxu0 %v499
        %v590 = vpop.f32.mrb[0].mxu0
        %v591 = vadd.f32 %v422, %v590
        %v592 = vpop.f32.mrb[0].mxu0
        %v593 = vpop.f32.mrb[0].mxu0
        %v594 = vadd.f32 %v422, %v593
        %v595 = vpop.f32.mrb[0].mxu0
        %596 = vmatprep.mubr.bf16.mxu0 0
        %597 = vmatmul.mubr.bf16.gmra.mrb[0].mxu0 %v502
        %v598 = vpop.f32.mrb[0].mxu0
        %v599 = vadd.f32 %v422, %v598
        %v600 = vpop.f32.mrb[0].mxu0
        %v601 = vpop.f32.mrb[0].mxu0
        %v602 = vadd.f32 %v422, %v601
        %v603 = vpop.f32.mrb[0].mxu0
        %604 = vdwg.mxu0
        %v605 = vmax.f32 %v543, 0.0
        %v606 = vmax.f32 %v546, 0.0
        %v607 = vmax.f32 %v551, 0.0
        %v608 = vmax.f32 %v554, 0.0
        %v609 = vmax.f32 %v559, 0.0
        %v610 = vmax.f32 %v562, 0.0
        %v611 = vmax.f32 %v567, 0.0
        %v612 = vmax.f32 %v570, 0.0
        %v613 = vmax.f32 %v575, 0.0
        %v614 = vmax.f32 %v578, 0.0
        %v615 = vmax.f32 %v583, 0.0
        %v616 = vmax.f32 %v586, 0.0
        %v617 = vmax.f32 %v591, 0.0
        %v618 = vmax.f32 %v594, 0.0
        %v619 = vmax.f32 %v599, 0.0
        %v620 = vmax.f32 %v602, 0.0
        %p621 = scmp.eq.s32.totalorder %s33, 0
        // Predicated region
        $region57: #{contrastive_forward.1} parent=55 // pred_check
          %p622 = pneg %p621
        $region58: #{contrastive_forward.1} parent=55 // pred_check_branch
          %624 = sbr.rel (%p622) target = $region60
        $region59: #{contrastive_forward.1} parent=55 // pred_region
          %625 = vst [vmem:[#allocation2] sm:$0x1] 0.0
        $region60: #{contrastive_forward.1} parent=55 // pred_fallthru
          _
        %v626 = vld [vmem:[#allocation2] sm:$0x1]
        %v627 = vadd.f32 %v605, %v606
        %v628 = vadd.f32 %v627, %v607
        %v629 = vadd.f32 %v628, %v608
        %v630 = vadd.f32 %v629, %v609
        %v631 = vadd.f32 %v630, %v610
        %v632 = vadd.f32 %v631, %v611
        %v633 = vadd.f32 %v632, %v612
        %v634 = vadd.f32 %v633, %v613
        %v635 = vadd.f32 %v634, %v614
        %v636 = vadd.f32 %v635, %v615
        %v637 = vadd.f32 %v636, %v616
        %v638 = vadd.f32 %v637, %v617
        %v639 = vadd.f32 %v638, %v618
        %v640 = vadd.f32 %v639, %v619
        %v641 = vadd.f32 %v640, %v620
        %v642 = vrot.slane %v641, 4
        %v643 = vadd.f32 %v641, %v642
        %v644 = vrot.slane %v643, 2
        %v645 = vadd.f32 %v643, %v644
        %v646 = vrot.slane %v645, 1
        %v647 = vadd.f32 %v645, %v646
        %v648 = vadd.f32 %v626, %v647
        %649 = vst [vmem:[#allocation2] sm:$0x1] %v648
        %p650 = scmp.eq.s32.totalorder %s33, 1
        // Predicated region
        $region61: #{contrastive_forward.1} parent=55 // pred_check
          %p651 = pneg %p650
        $region62: #{contrastive_forward.1} parent=55 // pred_check_branch
          %653 = sbr.rel (%p651) target = $region64
        $region63: #{contrastive_forward.1} parent=55 // pred_region
          %v654 = vld [vmem:[#allocation2] sm:$0x1]
          %v655 = vmul.f32 %v654, 0.00390625
          %v656 = vld [vmem:[%s3] sm:$0xff]
          %v657 = vld [vmem:[%s3 + $0x8] sm:$0xff]
          %v658 = vld [vmem:[%s3 + $0x10] sm:$0xff]
          %v659 = vld [vmem:[%s3 + $0x18] sm:$0xff]
          %v660 = vld [vmem:[%s3 + $0x20] sm:$0xff]
          %v661 = vld [vmem:[%s3 + $0x28] sm:$0xff]
          %v662 = vld [vmem:[%s3 + $0x30] sm:$0xff]
          %v663 = vld [vmem:[%s3 + $0x38] sm:$0xff]
          %v664 = vld [vmem:[%s3 + $0x40] sm:$0xff]
          %v665 = vld [vmem:[%s3 + $0x48] sm:$0xff]
          %v666 = vld [vmem:[%s3 + $0x50] sm:$0xff]
          %v667 = vld [vmem:[%s3 + $0x58] sm:$0xff]
          %v668 = vld [vmem:[%s3 + $0x60] sm:$0xff]
          %v669 = vld [vmem:[%s3 + $0x68] sm:$0xff]
          %v670 = vld [vmem:[%s3 + $0x70] sm:$0xff]
          %v671 = vld [vmem:[%s3 + $0x78] sm:$0xff]
          %v672 = vld [vmem:[%s4] sm:$0x1]
          %673 = vmatprep.subr.mxu0 0.0
          %674 = vmatpush1.msra.mxu0 %v656
          %675 = vmatprep.subr.mxu0 0.0
          %676 = vmatpush1.msra.mxu0 %v657
          %677 = vmatprep.subr.mxu0 0.0
          %678 = vmatpush1.msra.mxu0 %v658
          %679 = vmatprep.subr.mxu0 0.0
          %680 = vmatpush1.msra.mxu0 %v659
          %681 = vmatprep.subr.mxu0 0.0
          %682 = vmatpush1.msra.mxu0 %v660
          %683 = vmatprep.subr.mxu0 0.0
          %684 = vmatpush1.msra.mxu0 %v661
          %685 = vmatprep.subr.mxu0 0.0
          %686 = vmatpush1.msra.mxu0 %v662
          %687 = vmatprep.subr.mxu0 0.0
          %688 = vmatpush1.msra.mxu0 %v663
          %689 = vmatprep.subr.mxu0 0.0
          %690 = vmatpush1.msra.mxu0 %v664
          %691 = vmatprep.subr.mxu0 0.0
          %692 = vmatpush1.msra.mxu0 %v665
          %693 = vmatprep.subr.mxu0 0.0
          %694 = vmatpush1.msra.mxu0 %v666
          %695 = vmatprep.subr.mxu0 0.0
          %696 = vmatpush1.msra.mxu0 %v667
          %697 = vmatprep.subr.mxu0 0.0
          %698 = vmatpush1.msra.mxu0 %v668
          %699 = vmatprep.subr.mxu0 0.0
          %700 = vmatpush1.msra.mxu0 %v669
          %701 = vmatprep.subr.mxu0 0.0
          %702 = vmatpush1.msra.mxu0 %v670
          %703 = vmatprep.subr.mxu0 0.0
          %704 = vmatpush1.msra.mxu0 %v671
          %705 = vmatprep.subr.mxu0 0.0
          %706 = vmatpush1.msra.mxu0 0.0
          %707 = vmatprep.subr.mxu0 0.0
          %708 = vmatpush1.msra.mxu0 0.0
          %709 = vmatprep.subr.mxu0 0.0
          %710 = vmatpush1.msra.mxu0 0.0
          %711 = vmatprep.subr.mxu0 0.0
          %712 = vmatpush1.msra.mxu0 0.0
          %713 = vmatprep.subr.mxu0 0.0
          %714 = vmatpush1.msra.mxu0 0.0
          %715 = vmatprep.subr.mxu0 0.0
          %716 = vmatpush1.msra.mxu0 0.0
          %717 = vmatprep.subr.mxu0 0.0
          %718 = vmatpush1.msra.mxu0 0.0
          %719 = vmatprep.subr.mxu0 0.0
          %720 = vmatpush1.msra.mxu0 0.0
          %721 = vmatprep.subr.mxu0 0.0
          %722 = vmatpush1.msra.mxu0 0.0
          %723 = vmatprep.subr.mxu0 0.0
          %724 = vmatpush1.msra.mxu0 0.0
          %725 = vmatprep.subr.mxu0 0.0
          %726 = vmatpush1.msra.mxu0 0.0
          %727 = vmatprep.subr.mxu0 0.0
          %728 = vmatpush1.msra.mxu0 0.0
          %729 = vmatprep.subr.mxu0 0.0
          %730 = vmatpush1.msra.mxu0 0.0
          %731 = vmatprep.subr.mxu0 0.0
          %732 = vmatpush1.msra.mxu0 0.0
          %733 = vmatprep.subr.mxu0 0.0
          %734 = vmatpush1.msra.mxu0 0.0
          %735 = vmatprep.subr.mxu0 0.0
          %736 = vmatpush1.msra.mxu0 0.0
          %737 = vmatprep.mubr.f32.mxu0 0.0
          %738 = vmatmul.mubr.f32.gmra.mrb[0].mxu0 %v655
          %v739 = vpop.f32.mrb[0].mxu0
          %v740 = vadd.f32 %v672, %v739
          %v741 = vpop.f32.mrb[0].mxu0
          %742 = vdwg.mxu0
          %v743 = vld [vmem:[%s5] sm:$0xff]
          %v744 = vld [vmem:[%s5 + $0x8] sm:$0xff]
          %v745 = vld [vmem:[%s5 + $0x10] sm:$0xff]
          %v746 = vld [vmem:[%s5 + $0x18] sm:$0xff]
          %v747 = vld [vmem:[%s5 + $0x20] sm:$0xff]
          %v748 = vld [vmem:[%s5 + $0x28] sm:$0xff]
          %v749 = vld [vmem:[%s5 + $0x30] sm:$0xff]
          %v750 = vld [vmem:[%s5 + $0x38] sm:$0xff]
          %v751 = vld [vmem:[%s5 + $0x40] sm:$0xff]
          %v752 = vld [vmem:[%s5 + $0x48] sm:$0xff]
          %v753 = vld [vmem:[%s5 + $0x50] sm:$0xff]
          %v754 = vld [vmem:[%s5 + $0x58] sm:$0xff]
          %v755 = vld [vmem:[%s5 + $0x60] sm:$0xff]
          %v756 = vld [vmem:[%s5 + $0x68] sm:$0xff]
          %v757 = vld [vmem:[%s5 + $0x70] sm:$0xff]
          %v758 = vld [vmem:[%s5 + $0x78] sm:$0xff]
          %v759 = vld [vmem:[%s6] sm:$0x1]
          %760 = vmatprep.subr.mxu0 0.0
          %761 = vmatpush1.msra.mxu0 %v743
          %762 = vmatprep.subr.mxu0 0.0
          %763 = vmatpush1.msra.mxu0 %v744
          %764 = vmatprep.subr.mxu0 0.0
          %765 = vmatpush1.msra.mxu0 %v745
          %766 = vmatprep.subr.mxu0 0.0
          %767 = vmatpush1.msra.mxu0 %v746
          %768 = vmatprep.subr.mxu0 0.0
          %769 = vmatpush1.msra.mxu0 %v747
          %770 = vmatprep.subr.mxu0 0.0
          %771 = vmatpush1.msra.mxu0 %v748
          %772 = vmatprep.subr.mxu0 0.0
          %773 = vmatpush1.msra.mxu0 %v749
          %774 = vmatprep.subr.mxu0 0.0
          %775 = vmatpush1.msra.mxu0 %v750
          %776 = vmatprep.subr.mxu0 0.0
          %777 = vmatpush1.msra.mxu0 %v751
          %778 = vmatprep.subr.mxu0 0.0
          %779 = vmatpush1.msra.mxu0 %v752
          %780 = vmatprep.subr.mxu0 0.0
          %781 = vmatpush1.msra.mxu0 %v753
          %782 = vmatprep.subr.mxu0 0.0
          %783 = vmatpush1.msra.mxu0 %v754
          %784 = vmatprep.subr.mxu0 0.0
          %785 = vmatpush1.msra.mxu0 %v755
          %786 = vmatprep.subr.mxu0 0.0
          %787 = vmatpush1.msra.mxu0 %v756
          %788 = vmatprep.subr.mxu0 0.0
          %789 = vmatpush1.msra.mxu0 %v757
          %790 = vmatprep.subr.mxu0 0.0
          %791 = vmatpush1.msra.mxu0 %v758
          %792 = vmatprep.subr.mxu0 0.0
          %793 = vmatpush1.msra.mxu0 0.0
          %794 = vmatprep.subr.mxu0 0.0
          %795 = vmatpush1.msra.mxu0 0.0
          %796 = vmatprep.subr.mxu0 0.0
          %797 = vmatpush1.msra.mxu0 0.0
          %798 = vmatprep.subr.mxu0 0.0
          %799 = vmatpush1.msra.mxu0 0.0
          %800 = vmatprep.subr.mxu0 0.0
          %801 = vmatpush1.msra.mxu0 0.0
          %802 = vmatprep.subr.mxu0 0.0
          %803 = vmatpush1.msra.mxu0 0.0
          %804 = vmatprep.subr.mxu0 0.0
          %805 = vmatpush1.msra.mxu0 0.0
          %806 = vmatprep.subr.mxu0 0.0
          %807 = vmatpush1.msra.mxu0 0.0
          %808 = vmatprep.subr.mxu0 0.0
          %809 = vmatpush1.msra.mxu0 0.0
          %810 = vmatprep.subr.mxu0 0.0
          %811 = vmatpush1.msra.mxu0 0.0
          %812 = vmatprep.subr.mxu0 0.0
          %813 = vmatpush1.msra.mxu0 0.0
          %814 = vmatprep.subr.mxu0 0.0
          %815 = vmatpush1.msra.mxu0 0.0
          %816 = vmatprep.subr.mxu0 0.0
          %817 = vmatpush1.msra.mxu0 0.0
          %818 = vmatprep.subr.mxu0 0.0
          %819 = vmatpush1.msra.mxu0 0.0
          %820 = vmatprep.subr.mxu0 0.0
          %821 = vmatpush1.msra.mxu0 0.0
          %822 = vmatprep.subr.mxu0 0.0
          %823 = vmatpush1.msra.mxu0 0.0
          %824 = vmatprep.mubr.f32.mxu0 0.0
          %825 = vmatmul.mubr.f32.gmra.mrb[0].mxu0 %v740
          %v826 = vpop.f32.mrb[0].mxu0
          %v827 = vadd.f32 %v759, %v826
          %v828 = vpop.f32.mrb[0].mxu0
          %829 = vdwg.mxu0
          %v830 = vmax.f32 %v827, 0.0
          %v831 = vld [vmem:[%s7] sm:$0xff]
          %v832 = vld [vmem:[%s7 + $0x8] sm:$0xff]
          %v833 = vld [vmem:[%s7 + $0x10] sm:$0xff]
          %v834 = vld [vmem:[%s7 + $0x18] sm:$0xff]
          %v835 = vld [vmem:[%s7 + $0x20] sm:$0xff]
          %v836 = vld [vmem:[%s7 + $0x28] sm:$0xff]
          %v837 = vld [vmem:[%s7 + $0x30] sm:$0xff]
          %v838 = vld [vmem:[%s7 + $0x38] sm:$0xff]
          %v839 = vld [vmem:[%s7 + $0x40] sm:$0xff]
          %v840 = vld [vmem:[%s7 + $0x48] sm:$0xff]
          %v841 = vld [vmem:[%s7 + $0x50] sm:$0xff]
          %v842 = vld [vmem:[%s7 + $0x58] sm:$0xff]
          %v843 = vld [vmem:[%s7 + $0x60] sm:$0xff]
          %v844 = vld [vmem:[%s7 + $0x68] sm:$0xff]
          %v845 = vld [vmem:[%s7 + $0x70] sm:$0xff]
          %v846 = vld [vmem:[%s7 + $0x78] sm:$0xff]
          %v847 = vld [vmem:[%s8] sm:$0x1]
          %848 = vmatprep.subr.mxu0 0.0
          %849 = vmatpush1.msra.mxu0 %v831
          %850 = vmatprep.subr.mxu0 0.0
          %851 = vmatpush1.msra.mxu0 %v832
          %852 = vmatprep.subr.mxu0 0.0
          %853 = vmatpush1.msra.mxu0 %v833
          %854 = vmatprep.subr.mxu0 0.0
          %855 = vmatpush1.msra.mxu0 %v834
          %856 = vmatprep.subr.mxu0 0.0
          %857 = vmatpush1.msra.mxu0 %v835
          %858 = vmatprep.subr.mxu0 0.0
          %859 = vmatpush1.msra.mxu0 %v836
          %860 = vmatprep.subr.mxu0 0.0
          %861 = vmatpush1.msra.mxu0 %v837
          %862 = vmatprep.subr.mxu0 0.0
          %863 = vmatpush1.msra.mxu0 %v838
          %864 = vmatprep.subr.mxu0 0.0
          %865 = vmatpush1.msra.mxu0 %v839
          %866 = vmatprep.subr.mxu0 0.0
          %867 = vmatpush1.msra.mxu0 %v840
          %868 = vmatprep.subr.mxu0 0.0
          %869 = vmatpush1.msra.mxu0 %v841
          %870 = vmatprep.subr.mxu0 0.0
          %871 = vmatpush1.msra.mxu0 %v842
          %872 = vmatprep.subr.mxu0 0.0
          %873 = vmatpush1.msra.mxu0 %v843
          %874 = vmatprep.subr.mxu0 0.0
          %875 = vmatpush1.msra.mxu0 %v844
          %876 = vmatprep.subr.mxu0 0.0
          %877 = vmatpush1.msra.mxu0 %v845
          %878 = vmatprep.subr.mxu0 0.0
          %879 = vmatpush1.msra.mxu0 %v846
          %880 = vmatprep.subr.mxu0 0.0
          %881 = vmatpush1.msra.mxu0 0.0
          %882 = vmatprep.subr.mxu0 0.0
          %883 = vmatpush1.msra.mxu0 0.0
          %884 = vmatprep.subr.mxu0 0.0
          %885 = vmatpush1.msra.mxu0 0.0
          %886 = vmatprep.subr.mxu0 0.0
          %887 = vmatpush1.msra.mxu0 0.0
          %888 = vmatprep.subr.mxu0 0.0
          %889 = vmatpush1.msra.mxu0 0.0
          %890 = vmatprep.subr.mxu0 0.0
          %891 = vmatpush1.msra.mxu0 0.0
          %892 = vmatprep.subr.mxu0 0.0
          %893 = vmatpush1.msra.mxu0 0.0
          %894 = vmatprep.subr.mxu0 0.0
          %895 = vmatpush1.msra.mxu0 0.0
          %896 = vmatprep.subr.mxu0 0.0
          %897 = vmatpush1.msra.mxu0 0.0
          %898 = vmatprep.subr.mxu0 0.0
          %899 = vmatpush1.msra.mxu0 0.0
          %900 = vmatprep.subr.mxu0 0.0
          %901 = vmatpush1.msra.mxu0 0.0
          %902 = vmatprep.subr.mxu0 0.0
          %903 = vmatpush1.msra.mxu0 0.0
          %904 = vmatprep.subr.mxu0 0.0
          %905 = vmatpush1.msra.mxu0 0.0
          %906 = vmatprep.subr.mxu0 0.0
          %907 = vmatpush1.msra.mxu0 0.0
          %908 = vmatprep.subr.mxu0 0.0
          %909 = vmatpush1.msra.mxu0 0.0
          %910 = vmatprep.subr.mxu0 0.0
          %911 = vmatpush1.msra.mxu0 0.0
          %912 = vmatprep.mubr.f32.mxu0 0.0
          %913 = vmatmul.mubr.f32.gmra.mrb[0].mxu0 %v830
          %v914 = vpop.f32.mrb[0].mxu0
          %v915 = vadd.f32 %v847, %v914
          %v916 = vpop.f32.mrb[0].mxu0
          %917 = vdwg.mxu0
          %vm918 = vcmask 253952
          %919 = vst.msk [vmem:[%s378] sm:$0x1] %vm918, %v740
          %vm920 = vcmask 122880
          %921 = vst.msk [vmem:[%s384] sm:$0x1] %vm920, %v915
        $region64: #{contrastive_forward.1} parent=55 // pred_fallthru
          _
        %s922 = sand.u32 %s246, 1
        %s923 = scalar_lea.sflag [#allocation4], %s922
        %s924 = sand.u32 %s246, 1
        %s925 = scalar_lea.vmem [#allocation3], %s924
        %s926 = sand.u32 %s272, 1
        %s927 = scalar_lea.sflag [#allocation6], %s926
        %s928 = sand.u32 %s272, 1
        %s929 = scalar_lea.vmem [#allocation5], %s928
        // Predicated region
        $region65: #{contrastive_forward.1} parent=55 // pred_check
          %p930 = pneg %p256
        $region66: #{contrastive_forward.1} parent=55 // pred_check_branch
          %932 = sbr.rel (%p930) target = $region68
        $region67: #{contrastive_forward.1} parent=55 // pred_region
          %s934 = ssub.s32 16, 16
          %935 = vsyncadd %s923, %s934
          %s936 = smul.addr %s32, 16
          %s937 = scalar_lea.hbm %s9, %s936
          %s939 = sshll.u32 %s925, 4
          %s940 = int_to_ptr.vmem [resolvable:$true] %s939
          %942 = dma.vmem_to_hbm [thread:$0]  %s940, 16, %s937, %s923
        $region68: #{contrastive_forward.1} parent=55 // pred_fallthru
          _
        // Predicated region
        $region69: #{contrastive_forward.1} parent=55 // pred_check
          %p943 = pneg %p282
        $region70: #{contrastive_forward.1} parent=55 // pred_check_branch
          %945 = sbr.rel (%p943) target = $region72
        $region71: #{contrastive_forward.1} parent=55 // pred_region
          %s947 = ssub.s32 16, 16
          %948 = vsyncadd %s927, %s947
          %s949 = smul.addr %s32, 16
          %s950 = scalar_lea.hbm %s10, %s949
          %s952 = sshll.u32 %s929, 4
          %s953 = int_to_ptr.vmem [resolvable:$true] %s952
          %955 = dma.vmem_to_hbm [thread:$0]  %s953, 16, %s950, %s927
        $region72: #{contrastive_forward.1} parent=55 // pred_fallthru
          _
      $region56: #{contrastive_forward.1} parent=5 // pred_fallthru
        _
      %p956 = scmp.le.s32.totalorder 2, %s23
      // Predicated region
      $region73: #{contrastive_forward.1} parent=5 // pred_check
        %p957 = pneg %p956
      $region74: #{contrastive_forward.1} parent=5 // pred_check_branch
        %959 = sbr.rel (%p957) target = $region76
      $region75: #{contrastive_forward.1} parent=5 // pred_region
        %s960 = ssub.s32 %s23, 2
        // Predicated region
        $region77: #{contrastive_forward.1} parent=75 // pred_check
          %p961 = pneg %p262
        $region78: #{contrastive_forward.1} parent=75 // pred_check_branch
          %963 = sbr.rel (%p961) target = $region80
        $region79: #{contrastive_forward.1} parent=75 // pred_region
          %s964 = sand.u32 %s247, 1
          %s965 = scalar_lea.sflag [#allocation4], %s964
          %s966 = sand.u32 %s247, 1
          %s967 = scalar_lea.vmem [#allocation3], %s966
          %968 = dma.done %s965, 16
        $region80: #{contrastive_forward.1} parent=75 // pred_fallthru
          _
        // Predicated region
        $region81: #{contrastive_forward.1} parent=75 // pred_check
          %p969 = pneg %p288
        $region82: #{contrastive_forward.1} parent=75 // pred_check_branch
          %971 = sbr.rel (%p969) target = $region84
        $region83: #{contrastive_forward.1} parent=75 // pred_region
          %s972 = sand.u32 %s273, 1
          %s973 = scalar_lea.sflag [#allocation6], %s972
          %s974 = sand.u32 %s273, 1
          %s975 = scalar_lea.vmem [#allocation5], %s974
          %976 = dma.done %s973, 16
        $region84: #{contrastive_forward.1} parent=75 // pred_fallthru
          _
      $region76: #{contrastive_forward.1} parent=5 // pred_fallthru
        _
    $region6: #{contrastive_forward.1} parent=1 // loop_footer
      %s27 = sadd.s32 1, %s23
    $region7: #{contrastive_forward.1} parent=1 // loop_footer_branch
      %22 = sbr.rel target = $region3
    $region8: #{contrastive_forward.1} parent=1 // loop_exit
      _
    %977 = vsyncpa [#allocation4], 1
    %s978 = scalar_lea.sflag [#allocation4], 1
    %979 = vsyncpa %s978, 1
    %980 = vsyncpa [#allocation6], 1
    %s981 = scalar_lea.sflag [#allocation6], 1
    %982 = vsyncpa %s981, 1

</llo_original>
